<compile_context>
chip_gen: v7x
topology: tpu7x:2x2x1
jax: 0.10.0
libtpu: 0.0.40
codegen_flags: <defaults>
</compile_context>

<pallas_src>
import jax
import jax.numpy as jnp
from jax.experimental import pallas as pl
from jax.experimental.pallas import tpu as pltpu

IMG_FEATURES = 784
NUM_CLASSES = 10
IN_FEATURES = IMG_FEATURES + NUM_CLASSES   # 794
HIDDEN = 200                               # logical LayerNorm width
H_PAD = 256                                # hidden padded to 2 x 128 lanes
LN_EPS = 1e-5                              # torch.nn.LayerNorm default
LEAKY_SLOPE = 0.02                         # nn.LeakyReLU(0.02) in the module


def _discriminator_kernel(img_ref, lbl_ref, w1i_ref, w1l_ref, b1_ref,
                          gamma_ref, beta_ref, w2_ref, b2_ref, out_ref):
    # ---- Linear(794 -> 200), split into image + label dots (MXU, f32 acc) ----
    h = jnp.dot(img_ref[...], w1i_ref[...], preferred_element_type=jnp.float32)
    h = h + jnp.dot(lbl_ref[...], w1l_ref[...],
                    preferred_element_type=jnp.float32)
    h = h + b1_ref[...]

    # ---- LeakyReLU(0.02) (VPU); padded hidden lanes stay exactly 0 ----
    h = jnp.where(h > 0, h, LEAKY_SLOPE * h)

    # ---- LayerNorm over the logical 200 features (one-pass, /200 divisors) ----
    inv_n = 1.0 / HIDDEN
    mean = jnp.sum(h, axis=-1, keepdims=True) * inv_n
    ex2 = jnp.sum(h * h, axis=-1, keepdims=True) * inv_n
    var = ex2 - mean * mean
    h = (h - mean) * jax.lax.rsqrt(var + LN_EPS)
    h = h * gamma_ref[...] + beta_ref[...]        # gamma/beta pads are 0 -> pad lanes re-zeroed

    # ---- Linear(200 -> 1): VPU mul + cross-lane reduce, then Sigmoid (EUP) ----
    y = jnp.sum(h * w2_ref[...], axis=-1, keepdims=True) + b2_ref[...]
    out_ref[...] = jax.nn.sigmoid(y)
    # NOTE: the output array is (B, 1), so each (tile_b, 1) writeback is a
    # contiguous ~2 KB DMA (<0.3% of the x-tile stream); the lane-dense (1, B)
    # output transform from the review is skipped because the saving is
    # negligible at this output size.


def discriminator_forward_batched(images, labels, params, *, tile_b=512):
    """images: (B, 784), labels: (B, 10) -> (B, 1) f32."""
    w1_img, w1_lbl, b1, gamma, beta, w2, b2 = params
    act_dt = w1_img.dtype
    images = images.astype(act_dt)   # bf16 streaming by default
    labels = labels.astype(act_dt)

    B0 = images.shape[0]
    if B0 < 8:                       # need at least one 8-row sublane tile
        pad = 8 - B0
        images = jnp.pad(images, ((0, pad), (0, 0)))
        labels = jnp.pad(labels, ((0, pad), (0, 0)))
    B = images.shape[0]

    tile_b = max(8, (min(tile_b, B) // 8) * 8)
    grid = (pl.cdiv(B, tile_b),)     # ragged last tile handled by Pallas masking

    const = lambda i: (0, 0)         # resident weights: same block every step
    grid_spec = pltpu.PrefetchScalarGridSpec(
        num_scalar_prefetch=0,
        grid=grid,
        in_specs=[
            pl.BlockSpec((tile_b, IMG_FEATURES), lambda i: (i, 0)),  # images
            pl.BlockSpec((tile_b, NUM_CLASSES), lambda i: (i, 0)),   # labels
            pl.BlockSpec((IMG_FEATURES, H_PAD), const),              # w1_img
            pl.BlockSpec((NUM_CLASSES, H_PAD), const),               # w1_lbl
            pl.BlockSpec((1, H_PAD), const),                         # b1
            pl.BlockSpec((1, H_PAD), const),                         # gamma
            pl.BlockSpec((1, H_PAD), const),                         # beta
            pl.BlockSpec((1, H_PAD), const),                         # w2 (row)
            pl.BlockSpec((1, 1), const),                             # b2
        ],
        out_specs=pl.BlockSpec((tile_b, 1), lambda i: (i, 0)),
    )
    # TODO(synk): tag the constant-index weight specs with
    # pipeline_mode=pl.Buffered(1) (single resident buffer) and push the image
    # spec to pl.Buffered(3) on v7x once confirmed supported by the installed
    # Pallas; at tile_b<=1024 bf16 there is ample VMEM headroom without it.
    out = pl.pallas_call(
        _discriminator_kernel,
        out_shape=jax.ShapeDtypeStruct((B, 1), jnp.float32),
        grid_spec=grid_spec,
        compiler_params=pltpu.CompilerParams(
            dimension_semantics=("parallel",)),
    )(images, labels, w1_img, w1_lbl, b1, gamma, beta, w2, b2)
    return out[:B0]


def discriminator_forward(image_tensor, label_tensor, params, *, tile_b=512):
    """Un-batched forward matching the PyTorch module: (784,), (10,) -> (1,)."""
    out = discriminator_forward_batched(image_tensor[None, :],
                                        label_tensor[None, :],
                                        params, tile_b=tile_b)
    return out[0]


def init_params(key, w1_dtype=jnp.bfloat16):
    """nn.Linear default init (U(+-1/sqrt(fan_in))); LayerNorm gamma=1, beta=0.
    Hidden dim zero-padded 200 -> 256; W1 split into image/label blocks and
    stored in `w1_dtype` (bf16 by default for halved streaming traffic)."""
    k1, k2, k3, k4 = jax.random.split(key, 4)
    bound1 = 1.0 / jnp.sqrt(jnp.float32(IN_FEATURES))
    w1 = jax.random.uniform(k1, (IN_FEATURES, HIDDEN), jnp.float32,
                            minval=-bound1, maxval=bound1)
    w1 = jnp.zeros((IN_FEATURES, H_PAD), jnp.float32).at[:, :HIDDEN].set(w1)
    w1_img = w1[:IMG_FEATURES].astype(w1_dtype)
    w1_lbl = w1[IMG_FEATURES:].astype(w1_dtype)
    b1 = jnp.zeros((1, H_PAD), jnp.float32).at[:, :HIDDEN].set(
        jax.random.uniform(k2, (1, HIDDEN), jnp.float32,
                           minval=-bound1, maxval=bound1))
    gamma = jnp.zeros((1, H_PAD), jnp.float32).at[:, :HIDDEN].set(1.0)
    beta = jnp.zeros((1, H_PAD), jnp.float32)
    bound2 = 1.0 / jnp.sqrt(jnp.float32(HIDDEN))
    w2 = jnp.zeros((1, H_PAD), jnp.float32).at[:, :HIDDEN].set(
        jax.random.uniform(k3, (1, HIDDEN), jnp.float32,
                           minval=-bound2, maxval=bound2))
    b2 = jax.random.uniform(k4, (1, 1), jnp.float32,
                            minval=-bound2, maxval=bound2)
    return (w1_img, w1_lbl, b1, gamma, beta, w2, b2)


def _reference(images, labels, params):
    """Pure-JAX reference (unpadded hidden dim) mirroring the PyTorch module,
    using the same bf16 inputs / f32 accumulation as the kernel."""
    w1_img, w1_lbl, b1, gamma, beta, w2, b2 = params
    x = jnp.concatenate([images, labels], axis=-1).astype(w1_img.dtype)
    w1 = jnp.concatenate([w1_img, w1_lbl], axis=0)[:, :HIDDEN]
    h = jnp.dot(x, w1, preferred_element_type=jnp.float32) + b1[:, :HIDDEN]
    h = jnp.where(h > 0, h, LEAKY_SLOPE * h)
    mu = jnp.mean(h, axis=-1, keepdims=True)
    var = jnp.mean((h - mu) ** 2, axis=-1, keepdims=True)
    h = (h - mu) * jax.lax.rsqrt(var + LN_EPS) * gamma[:, :HIDDEN] + beta[:, :HIDDEN]
    return jax.nn.sigmoid(jnp.dot(h, w2[:, :HIDDEN].T) + b2)


if __name__ == "__main__":
    key = jax.random.PRNGKey(0)
    k_params, k_img, k_bimg, k_blbl = jax.random.split(key, 4)
    params = init_params(k_params)        # bf16 W1 / bf16 activation streaming

    # 1) Un-batched forward: exact shape semantics of the PyTorch module.
    image = jax.random.uniform(k_img, (IMG_FEATURES,), jnp.float32)
    label = jax.nn.one_hot(3, NUM_CLASSES, dtype=jnp.float32)
    out1 = jax.block_until_ready(discriminator_forward(image, label, params))
    ref1 = _reference(image[None, :], label[None, :], params)[0]
    assert out1.shape == (1,)
    assert jnp.allclose(out1, ref1, atol=1e-3, rtol=1e-3), (out1, ref1)

    # 2) Batched forward exercising a multi-step grid with a ragged last tile
    #    (B=130, tile_b=128 -> 2 grid steps, second tile boundary-masked),
    #    with weights resident in VMEM across grid steps.
    B = 130
    images = jax.random.uniform(k_bimg, (B, IMG_FEATURES), jnp.float32)
    labels = jax.nn.one_hot(
        jax.random.randint(k_blbl, (B,), 0, NUM_CLASSES), NUM_CLASSES,
        dtype=jnp.float32)
    out2 = jax.block_until_ready(
        discriminator_forward_batched(images, labels, params, tile_b=128))
    ref2 = _reference(images, labels, params)
    assert out2.shape == (B, 1)
    assert jnp.allclose(out2, ref2, atol=1e-3, rtol=1e-3), \
        float(jnp.max(jnp.abs(out2 - ref2)))

    print("KERNEL_OK")
</pallas_src>

<mosaic_0001>
module attributes {stable_mosaic.version = 11 : i64} {
  func.func @_discriminator_kernel(%arg0: i32, %arg1: memref<8x784xbf16, #tpu.memory_space<vmem>>, %arg2: memref<8x10xbf16, #tpu.memory_space<vmem>>, %arg3: memref<784x256xbf16, #tpu.memory_space<vmem>>, %arg4: memref<10x256xbf16, #tpu.memory_space<vmem>>, %arg5: memref<1x256xf32, #tpu.memory_space<vmem>>, %arg6: memref<1x256xf32, #tpu.memory_space<vmem>>, %arg7: memref<1x256xf32, #tpu.memory_space<vmem>>, %arg8: memref<1x256xf32, #tpu.memory_space<vmem>>, %arg9: memref<1x1xf32, #tpu.memory_space<vmem>>, %arg10: memref<8x1xf32, #tpu.memory_space<vmem>>) attributes {dimension_semantics = [#tpu.dimension_semantics<parallel>], iteration_bounds = array<i64: 1>, scalar_prefetch = 0 : i64, scratch_operands = 0 : i64, tpu.core_type = #tpu.core_type<tc>, window_params = [{transform_indices = @transform_0, window_bounds = array<i64: 8, 784>}, {transform_indices = @transform_1, window_bounds = array<i64: 8, 10>}, {pipeline_mode = #tpu.pipeline_mode<synchronous>, transform_indices = @transform_2, window_bounds = array<i64: 784, 256>}, {pipeline_mode = #tpu.pipeline_mode<synchronous>, transform_indices = @transform_3, window_bounds = array<i64: 10, 256>}, {pipeline_mode = #tpu.pipeline_mode<synchronous>, transform_indices = @transform_4, window_bounds = array<i64: 1, 256>}, {pipeline_mode = #tpu.pipeline_mode<synchronous>, transform_indices = @transform_5, window_bounds = array<i64: 1, 256>}, {pipeline_mode = #tpu.pipeline_mode<synchronous>, transform_indices = @transform_6, window_bounds = array<i64: 1, 256>}, {pipeline_mode = #tpu.pipeline_mode<synchronous>, transform_indices = @transform_7, window_bounds = array<i64: 1, 256>}, {pipeline_mode = #tpu.pipeline_mode<synchronous>, transform_indices = @transform_8, window_bounds = array<i64: 1, 1>}, {transform_indices = @transform_9, window_bounds = array<i64: 8, 1>}]} {
    %c0 = arith.constant 0 : index
    %c0_0 = arith.constant 0 : index
    %0 = vector.load %arg1[%c0, %c0_0] : memref<8x784xbf16, #tpu.memory_space<vmem>>, vector<8x784xbf16>
    %c0_1 = arith.constant 0 : index
    %c0_2 = arith.constant 0 : index
    %1 = vector.load %arg3[%c0_1, %c0_2] : memref<784x256xbf16, #tpu.memory_space<vmem>>, vector<784x256xbf16>
    %cst = arith.constant dense<0.000000e+00> : vector<8x256xf32>
    %2 = tpu.matmul %0, %1, %cst {dimension_numbers = #tpu.dot_dimension_numbers<[1], [0], [0], [1], [0, 0, 1, 1], [], []>} : vector<8x784xbf16>, vector<784x256xbf16>, vector<8x256xf32> -> vector<8x256xf32>
    %c0_3 = arith.constant 0 : index
    %c0_4 = arith.constant 0 : index
    %3 = vector.load %arg2[%c0_3, %c0_4] : memref<8x10xbf16, #tpu.memory_space<vmem>>, vector<8x10xbf16>
    %c0_5 = arith.constant 0 : index
    %c0_6 = arith.constant 0 : index
    %4 = vector.load %arg4[%c0_5, %c0_6] : memref<10x256xbf16, #tpu.memory_space<vmem>>, vector<10x256xbf16>
    %cst_7 = arith.constant dense<0.000000e+00> : vector<8x256xf32>
    %5 = tpu.matmul %3, %4, %cst_7 {dimension_numbers = #tpu.dot_dimension_numbers<[1], [0], [0], [1], [0, 0, 1, 1], [], []>} : vector<8x10xbf16>, vector<10x256xbf16>, vector<8x256xf32> -> vector<8x256xf32>
    %6 = arith.addf %2, %5 : vector<8x256xf32>
    %c0_8 = arith.constant 0 : index
    %c0_9 = arith.constant 0 : index
    %7 = vector.load %arg5[%c0_8, %c0_9] : memref<1x256xf32, #tpu.memory_space<vmem>>, vector<1x256xf32>
    %8 = vector.broadcast %7 : vector<1x256xf32> to vector<8x256xf32>
    %9 = arith.addf %6, %8 : vector<8x256xf32>
    %cst_10 = arith.constant 0.000000e+00 : f32
    %10 = vector.broadcast %cst_10 : f32 to vector<8x256xf32>
    %11 = arith.cmpf ogt, %9, %10 : vector<8x256xf32>
    %cst_11 = arith.constant 2.000000e-02 : f32
    %12 = vector.broadcast %cst_11 : f32 to vector<8x256xf32>
    %13 = arith.mulf %12, %9 : vector<8x256xf32>
    %14 = arith.select %11, %9, %13 : vector<8x256xi1>, vector<8x256xf32>
    %cst_12 = arith.constant dense<0.000000e+00> : vector<8xf32>
    %15 = vector.multi_reduction <add>, %14, %cst_12 [1] : vector<8x256xf32> to vector<8xf32>
    %16 = vector.shape_cast %15 : vector<8xf32> to vector<8x1xf32>
    %cst_13 = arith.constant 5.000000e-03 : f32
    %17 = vector.broadcast %cst_13 : f32 to vector<8x1xf32>
    %18 = arith.mulf %16, %17 : vector<8x1xf32>
    %19 = arith.mulf %14, %14 : vector<8x256xf32>
    %cst_14 = arith.constant dense<0.000000e+00> : vector<8xf32>
    %20 = vector.multi_reduction <add>, %19, %cst_14 [1] : vector<8x256xf32> to vector<8xf32>
    %21 = vector.shape_cast %20 : vector<8xf32> to vector<8x1xf32>
    %cst_15 = arith.constant 5.000000e-03 : f32
    %22 = vector.broadcast %cst_15 : f32 to vector<8x1xf32>
    %23 = arith.mulf %21, %22 : vector<8x1xf32>
    %24 = arith.mulf %18, %18 : vector<8x1xf32>
    %25 = arith.subf %23, %24 : vector<8x1xf32>
    %26 = vector.broadcast %18 : vector<8x1xf32> to vector<8x256xf32>
    %27 = arith.subf %14, %26 : vector<8x256xf32>
    %cst_16 = arith.constant 9.99999974E-6 : f32
    %28 = vector.broadcast %cst_16 : f32 to vector<8x1xf32>
    %29 = arith.addf %25, %28 : vector<8x1xf32>
    %30 = math.rsqrt %29 : vector<8x1xf32>
    %31 = vector.broadcast %30 : vector<8x1xf32> to vector<8x256xf32>
    %32 = arith.mulf %27, %31 : vector<8x256xf32>
    %c0_17 = arith.constant 0 : index
    %c0_18 = arith.constant 0 : index
    %33 = vector.load %arg6[%c0_17, %c0_18] : memref<1x256xf32, #tpu.memory_space<vmem>>, vector<1x256xf32>
    %34 = vector.broadcast %33 : vector<1x256xf32> to vector<8x256xf32>
    %35 = arith.mulf %32, %34 : vector<8x256xf32>
    %c0_19 = arith.constant 0 : index
    %c0_20 = arith.constant 0 : index
    %36 = vector.load %arg7[%c0_19, %c0_20] : memref<1x256xf32, #tpu.memory_space<vmem>>, vector<1x256xf32>
    %37 = vector.broadcast %36 : vector<1x256xf32> to vector<8x256xf32>
    %38 = arith.addf %35, %37 : vector<8x256xf32>
    %c0_21 = arith.constant 0 : index
    %c0_22 = arith.constant 0 : index
    %39 = vector.load %arg8[%c0_21, %c0_22] : memref<1x256xf32, #tpu.memory_space<vmem>>, vector<1x256xf32>
    %40 = vector.broadcast %39 : vector<1x256xf32> to vector<8x256xf32>
    %41 = arith.mulf %38, %40 : vector<8x256xf32>
    %cst_23 = arith.constant dense<0.000000e+00> : vector<8xf32>
    %42 = vector.multi_reduction <add>, %41, %cst_23 [1] : vector<8x256xf32> to vector<8xf32>
    %43 = vector.shape_cast %42 : vector<8xf32> to vector<8x1xf32>
    %c0_24 = arith.constant 0 : index
    %c0_25 = arith.constant 0 : index
    %44 = vector.load %arg9[%c0_24, %c0_25] : memref<1x1xf32, #tpu.memory_space<vmem>>, vector<1x1xf32>
    %45 = vector.broadcast %44 : vector<1x1xf32> to vector<8x1xf32>
    %46 = arith.addf %43, %45 : vector<8x1xf32>
    %47 = arith.negf %46 : vector<8x1xf32>
    %48 = math.exp %47 : vector<8x1xf32>
    %cst_26 = arith.constant 1.000000e+00 : f32
    %49 = vector.broadcast %cst_26 : f32 to vector<8x1xf32>
    %50 = arith.addf %49, %48 : vector<8x1xf32>
    %51 = arith.divf %49, %50 : vector<8x1xf32>
    %c0_27 = arith.constant 0 : index
    %c0_28 = arith.constant 0 : index
    %52 = vector.load %arg10[%c0_27, %c0_28] : memref<8x1xf32, #tpu.memory_space<vmem>>, vector<8x1xf32>
    tpu.vector_store %arg10[%c0_27, %c0_28], %51 {strides = array<i32>} : memref<8x1xf32, #tpu.memory_space<vmem>>, vector<8x1xf32>,
    return
  }
  func.func @transform_0(%arg0: i32) -> (i32, i32) {
    %c0_i32 = arith.constant 0 : i32
    %c0_i32_0 = arith.constant 0 : i32
    return %arg0, %c0_i32 : i32, i32
  }
  func.func @transform_1(%arg0: i32) -> (i32, i32) {
    %c0_i32 = arith.constant 0 : i32
    %c0_i32_0 = arith.constant 0 : i32
    return %arg0, %c0_i32 : i32, i32
  }
  func.func @transform_2(%arg0: i32) -> (i32, i32) {
    %c0_i32 = arith.constant 0 : i32
    %c0_i32_0 = arith.constant 0 : i32
    %c0_i32_1 = arith.constant 0 : i32
    return %c0_i32, %c0_i32_0 : i32, i32
  }
  func.func @transform_3(%arg0: i32) -> (i32, i32) {
    %c0_i32 = arith.constant 0 : i32
    %c0_i32_0 = arith.constant 0 : i32
    %c0_i32_1 = arith.constant 0 : i32
    return %c0_i32, %c0_i32_0 : i32, i32
  }
  func.func @transform_4(%arg0: i32) -> (i32, i32) {
    %c0_i32 = arith.constant 0 : i32
    %c0_i32_0 = arith.constant 0 : i32
    %c0_i32_1 = arith.constant 0 : i32
    return %c0_i32, %c0_i32_0 : i32, i32
  }
  func.func @transform_5(%arg0: i32) -> (i32, i32) {
    %c0_i32 = arith.constant 0 : i32
    %c0_i32_0 = arith.constant 0 : i32
    %c0_i32_1 = arith.constant 0 : i32
    return %c0_i32, %c0_i32_0 : i32, i32
  }
  func.func @transform_6(%arg0: i32) -> (i32, i32) {
    %c0_i32 = arith.constant 0 : i32
    %c0_i32_0 = arith.constant 0 : i32
    %c0_i32_1 = arith.constant 0 : i32
    return %c0_i32, %c0_i32_0 : i32, i32
  }
  func.func @transform_7(%arg0: i32) -> (i32, i32) {
    %c0_i32 = arith.constant 0 : i32
    %c0_i32_0 = arith.constant 0 : i32
    %c0_i32_1 = arith.constant 0 : i32
    return %c0_i32, %c0_i32_0 : i32, i32
  }
  func.func @transform_8(%arg0: i32) -> (i32, i32) {
    %c0_i32 = arith.constant 0 : i32
    %c0_i32_0 = arith.constant 0 : i32
    %c0_i32_1 = arith.constant 0 : i32
    return %c0_i32, %c0_i32_0 : i32, i32
  }
  func.func @transform_9(%arg0: i32) -> (i32, i32) {
    %c0_i32 = arith.constant 0 : i32
    %c0_i32_0 = arith.constant 0 : i32
    return %arg0, %c0_i32 : i32, i32
  }
}

</mosaic_0001>

<llo_original>
// kernel: tpu_custom_call.1
$region0: #{tpu_custom_call.1}
  #allocation0 [shape = 'u32[]', space=smem, size = 0x4, offset = 0x4, fixed_abs, tag = 'smem constant byte address 0x4 - core index']
  #allocation1 [shape = 'u32[144,128]{1,0:T(1,128)}', space=vmem, size = 0x12000, scoped, tag = 'internal scratch']
  #allocation2 [shape = 'f32[1,1]{1,0:T(1,128)S(1)}', space=vmem, size = 0x200, scoped, tag = 'scoped memory for tpu_custom_call.1']
  %s0 = inlined_call_operand.hbm [shape: bf16[8,784], index: 0, kind: input, shape index: {}]
  %s1 = inlined_call_operand.vmem [shape: bf16[8,10], index: 1, kind: input, shape index: {}]
  %s2 = inlined_call_operand.hbm [shape: bf16[784,256], index: 2, kind: input, shape index: {}]
  %s3 = inlined_call_operand.hbm [shape: bf16[10,256], index: 3, kind: input, shape index: {}]
  %s4 = inlined_call_operand.vmem [shape: f32[1,256], index: 4, kind: input, shape index: {}]
  %s5 = inlined_call_operand.vmem [shape: f32[1,256], index: 5, kind: input, shape index: {}]
  %s6 = inlined_call_operand.vmem [shape: f32[1,256], index: 6, kind: input, shape index: {}]
  %s7 = inlined_call_operand.vmem [shape: f32[1,256], index: 7, kind: input, shape index: {}]
  %s8 = inlined_call_operand.<no memory space> [shape: f32[1,1], index: 8, kind: input, shape index: {}]
  %s9 = inlined_call_operand.vmem [shape: f32[8,1], index: 9, kind: output, shape index: {}]
  %s10 = sld [smem:[#allocation0]]
  $region58: #{tpu_custom_call.1} parent=0
    _
  %s12 = ssub.s32 1, %s10
  %s13 = scalar_select 0, %s12, %s10
  %v14 = vstv %s8
  %15 = vst [vmem:[#allocation2] sm:$0x1] %v14
  $region1: #{tpu_custom_call.1} parent=0
    #allocation3 [shape = 'u8[14336]{0}', space=vmem, size = 0x3800, scoped, tag = 'input window, operand 0, single buffered']
    #allocation4 [shape = 's32[1]{0}', space=sflag, size = 0x4, scoped, tag = 'scoped memory for tpu_custom_call.1']
    #allocation5 [shape = 'u8[401408]{0}', space=vmem, size = 0x62000, scoped, tag = 'input window, operand 2, single buffered']
    #allocation6 [shape = 's32[1]{0}', space=sflag, size = 0x4, scoped, tag = 'scoped memory for tpu_custom_call.1']
    #allocation7 [shape = 'u8[8192]{0}', space=vmem, size = 0x2000, scoped, tag = 'input window, operand 3, single buffered']
    %16 = vsyncpa [#allocation4], 0
    %17 = vsyncpa [#allocation6], 0
    // Predicated region
    $region2: #{tpu_custom_call.1} parent=1 // pred_check
      _
    $region3: #{tpu_custom_call.1} parent=1 // pred_check_branch
      %19 = sbr.rel (0) target = $region5
    $region4: #{tpu_custom_call.1} parent=1 // pred_region
      %s21 = ssub.s32 448, 448
      %22 = vsyncadd [#allocation4], %s21
      %s24 = sshll.u32 [#allocation3], 4
      %s25 = int_to_ptr.vmem [resolvable:$true] %s24
      %27 = dma.hbm_to_vmem [thread:$0]  %s0, 448, %s25, [#allocation4]
    $region5: #{tpu_custom_call.1} parent=1 // pred_fallthru
      _
    // Predicated region
    $region6: #{tpu_custom_call.1} parent=1 // pred_check
      _
    $region7: #{tpu_custom_call.1} parent=1 // pred_check_branch
      %29 = sbr.rel (0) target = $region9
    $region8: #{tpu_custom_call.1} parent=1 // pred_region
      _
    $region9: #{tpu_custom_call.1} parent=1 // pred_fallthru
      _
    // Predicated region
    $region10: #{tpu_custom_call.1} parent=1 // pred_check
      _
    $region11: #{tpu_custom_call.1} parent=1 // pred_check_branch
      %31 = sbr.rel (0) target = $region13
    $region12: #{tpu_custom_call.1} parent=1 // pred_region
      %s33 = ssub.s32 12544, 12544
      %34 = vsyncadd [#allocation6], %s33
      %s35 = sshll.u32 [#allocation5], 4
      %s36 = int_to_ptr.vmem [resolvable:$true] %s35
      %41 = dma.hbm_to_vmem [thread:$0]  %s2, 12544, %s36, [#allocation6], 128, 128, 8
    $region13: #{tpu_custom_call.1} parent=1 // pred_fallthru
      _
    // Predicated region
    $region14: #{tpu_custom_call.1} parent=1 // pred_check
      _
    $region15: #{tpu_custom_call.1} parent=1 // pred_check_branch
      %43 = sbr.rel (0) target = $region17
    $region16: #{tpu_custom_call.1} parent=1 // pred_region
      %s45 = ssub.s32 256, 256
      %46 = vsyncadd [#allocation6], %s45
      %s47 = sshll.u32 [#allocation7], 4
      %s48 = int_to_ptr.vmem [resolvable:$true] %s47
      %53 = dma.hbm_to_vmem [thread:$0]  %s3, 256, %s48, [#allocation6], 128, 128, 8
    $region17: #{tpu_custom_call.1} parent=1 // pred_fallthru
      _
    // Predicated region
    $region18: #{tpu_custom_call.1} parent=1 // pred_check
      _
    $region19: #{tpu_custom_call.1} parent=1 // pred_check_branch
      %55 = sbr.rel (0) target = $region21
    $region20: #{tpu_custom_call.1} parent=1 // pred_region
      _
    $region21: #{tpu_custom_call.1} parent=1 // pred_fallthru
      _
    // Predicated region
    $region22: #{tpu_custom_call.1} parent=1 // pred_check
      _
    $region23: #{tpu_custom_call.1} parent=1 // pred_check_branch
      %57 = sbr.rel (0) target = $region25
    $region24: #{tpu_custom_call.1} parent=1 // pred_region
      _
    $region25: #{tpu_custom_call.1} parent=1 // pred_fallthru
      _
    // Predicated region
    $region26: #{tpu_custom_call.1} parent=1 // pred_check
      _
    $region27: #{tpu_custom_call.1} parent=1 // pred_check_branch
      %59 = sbr.rel (0) target = $region29
    $region28: #{tpu_custom_call.1} parent=1 // pred_region
      _
    $region29: #{tpu_custom_call.1} parent=1 // pred_fallthru
      _
    // Predicated region
    $region30: #{tpu_custom_call.1} parent=1 // pred_check
      _
    $region31: #{tpu_custom_call.1} parent=1 // pred_check_branch
      %61 = sbr.rel (0) target = $region33
    $region32: #{tpu_custom_call.1} parent=1 // pred_region
      _
    $region33: #{tpu_custom_call.1} parent=1 // pred_fallthru
      _
    // Predicated region
    $region34: #{tpu_custom_call.1} parent=1 // pred_check
      _
    $region35: #{tpu_custom_call.1} parent=1 // pred_check_branch
      %63 = sbr.rel (0) target = $region37
    $region36: #{tpu_custom_call.1} parent=1 // pred_region
      _
    $region37: #{tpu_custom_call.1} parent=1 // pred_fallthru
      _
    // Predicated region
    $region38: #{tpu_custom_call.1} parent=1 // pred_check
      _
    $region39: #{tpu_custom_call.1} parent=1 // pred_check_branch
      %65 = sbr.rel (0) target = $region41
    $region40: #{tpu_custom_call.1} parent=1 // pred_region
      %66 = dma.done [#allocation4], 448
    $region41: #{tpu_custom_call.1} parent=1 // pred_fallthru
      _
    // Predicated region
    $region42: #{tpu_custom_call.1} parent=1 // pred_check
      _
    $region43: #{tpu_custom_call.1} parent=1 // pred_check_branch
      %68 = sbr.rel (0) target = $region45
    $region44: #{tpu_custom_call.1} parent=1 // pred_region
      %69 = dma.done [#allocation6], 12544
    $region45: #{tpu_custom_call.1} parent=1 // pred_fallthru
      _
    // Predicated region
    $region46: #{tpu_custom_call.1} parent=1 // pred_check
      _
    $region47: #{tpu_custom_call.1} parent=1 // pred_check_branch
      %71 = sbr.rel (0) target = $region49
    $region48: #{tpu_custom_call.1} parent=1 // pred_region
      %72 = dma.done [#allocation6], 256
    $region49: #{tpu_custom_call.1} parent=1 // pred_fallthru
      _
    %v74 = vld [vmem:[#allocation3] sm:$0xff]
    %v75 = vld [vmem:[#allocation3 + $0x8] sm:$0xff]
    %v76 = vld [vmem:[#allocation3 + $0x10] sm:$0xff]
    %v77 = vld [vmem:[#allocation3 + $0x18] sm:$0xf]
    %v78 = vld [vmem:[#allocation5] sm:$0xff]
    %v79 = vld [vmem:[#allocation5 + $0x8] sm:$0xff]
    %v80 = vld [vmem:[#allocation5 + $0x10] sm:$0xff]
    %v81 = vld [vmem:[#allocation5 + $0x18] sm:$0xff]
    %v82 = vld [vmem:[#allocation5 + $0x20] sm:$0xff]
    %v83 = vld [vmem:[#allocation5 + $0x28] sm:$0xff]
    %v84 = vld [vmem:[#allocation5 + $0x30] sm:$0xff]
    %v85 = vld [vmem:[#allocation5 + $0x38] sm:$0xff]
    %v86 = vld [vmem:[#allocation5 + $0x40] sm:$0xff]
    %v87 = vld [vmem:[#allocation5 + $0x48] sm:$0xff]
    %v88 = vld [vmem:[#allocation5 + $0x50] sm:$0xff]
    %v89 = vld [vmem:[#allocation5 + $0x58] sm:$0xff]
    %v90 = vld [vmem:[#allocation5 + $0x60] sm:$0xff]
    %v91 = vld [vmem:[#allocation5 + $0x68] sm:$0xff]
    %v92 = vld [vmem:[#allocation5 + $0x70] sm:$0xff]
    %v93 = vld [vmem:[#allocation5 + $0x78] sm:$0xff]
    %v94 = vld [vmem:[#allocation5 + $0x80] sm:$0xff]
    %v95 = vld [vmem:[#allocation5 + $0x88] sm:$0xff]
    %v96 = vld [vmem:[#allocation5 + $0x90] sm:$0xff]
    %v97 = vld [vmem:[#allocation5 + $0x98] sm:$0xff]
    %v98 = vld [vmem:[#allocation5 + $0xa0] sm:$0xff]
    %v99 = vld [vmem:[#allocation5 + $0xa8] sm:$0xff]
    %v100 = vld [vmem:[#allocation5 + $0xb0] sm:$0xff]
    %v101 = vld [vmem:[#allocation5 + $0xb8] sm:$0xff]
    %v102 = vld [vmem:[#allocation5 + $0xc0] sm:$0xff]
    %v103 = vld [vmem:[#allocation5 + $0xc8] sm:$0xff]
    %v104 = vld [vmem:[#allocation5 + $0xd0] sm:$0xff]
    %v105 = vld [vmem:[#allocation5 + $0xd8] sm:$0xff]
    %v106 = vld [vmem:[#allocation5 + $0xe0] sm:$0xff]
    %v107 = vld [vmem:[#allocation5 + $0xe8] sm:$0xff]
    %v108 = vld [vmem:[#allocation5 + $0xf0] sm:$0xff]
    %v109 = vld [vmem:[#allocation5 + $0xf8] sm:$0xff]
    %v110 = vld [vmem:[#allocation5 + $0x100] sm:$0xff]
    %v111 = vld [vmem:[#allocation5 + $0x108] sm:$0xff]
    %v112 = vld [vmem:[#allocation5 + $0x110] sm:$0xff]
    %v113 = vld [vmem:[#allocation5 + $0x118] sm:$0xff]
    %v114 = vld [vmem:[#allocation5 + $0x120] sm:$0xff]
    %v115 = vld [vmem:[#allocation5 + $0x128] sm:$0xff]
    %v116 = vld [vmem:[#allocation5 + $0x130] sm:$0xff]
    %v117 = vld [vmem:[#allocation5 + $0x138] sm:$0xff]
    %v118 = vld [vmem:[#allocation5 + $0x140] sm:$0xff]
    %v119 = vld [vmem:[#allocation5 + $0x148] sm:$0xff]
    %v120 = vld [vmem:[#allocation5 + $0x150] sm:$0xff]
    %v121 = vld [vmem:[#allocation5 + $0x158] sm:$0xff]
    %v122 = vld [vmem:[#allocation5 + $0x160] sm:$0xff]
    %v123 = vld [vmem:[#allocation5 + $0x168] sm:$0xff]
    %v124 = vld [vmem:[#allocation5 + $0x170] sm:$0xff]
    %v125 = vld [vmem:[#allocation5 + $0x178] sm:$0xff]
    %v126 = vld [vmem:[#allocation5 + $0x180] sm:$0xff]
    %v127 = vld [vmem:[#allocation5 + $0x188] sm:$0xff]
    %v128 = vld [vmem:[#allocation5 + $0x190] sm:$0xff]
    %v129 = vld [vmem:[#allocation5 + $0x198] sm:$0xff]
    %v130 = vld [vmem:[#allocation5 + $0x1a0] sm:$0xff]
    %v131 = vld [vmem:[#allocation5 + $0x1a8] sm:$0xff]
    %v132 = vld [vmem:[#allocation5 + $0x1b0] sm:$0xff]
    %v133 = vld [vmem:[#allocation5 + $0x1b8] sm:$0xff]
    %v134 = vld [vmem:[#allocation5 + $0x1c0] sm:$0xff]
    %v135 = vld [vmem:[#allocation5 + $0x1c8] sm:$0xff]
    %v136 = vld [vmem:[#allocation5 + $0x1d0] sm:$0xff]
    %v137 = vld [vmem:[#allocation5 + $0x1d8] sm:$0xff]
    %v138 = vld [vmem:[#allocation5 + $0x1e0] sm:$0xff]
    %v139 = vld [vmem:[#allocation5 + $0x1e8] sm:$0xff]
    %v140 = vld [vmem:[#allocation5 + $0x1f0] sm:$0xff]
    %v141 = vld [vmem:[#allocation5 + $0x1f8] sm:$0xff]
    %v142 = vld [vmem:[#allocation5 + $0x200] sm:$0xff]
    %v143 = vld [vmem:[#allocation5 + $0x208] sm:$0xff]
    %v144 = vld [vmem:[#allocation5 + $0x210] sm:$0xff]
    %v145 = vld [vmem:[#allocation5 + $0x218] sm:$0xff]
    %v146 = vld [vmem:[#allocation5 + $0x220] sm:$0xff]
    %v147 = vld [vmem:[#allocation5 + $0x228] sm:$0xff]
    %v148 = vld [vmem:[#allocation5 + $0x230] sm:$0xff]
    %v149 = vld [vmem:[#allocation5 + $0x238] sm:$0xff]
    %v150 = vld [vmem:[#allocation5 + $0x240] sm:$0xff]
    %v151 = vld [vmem:[#allocation5 + $0x248] sm:$0xff]
    %v152 = vld [vmem:[#allocation5 + $0x250] sm:$0xff]
    %v153 = vld [vmem:[#allocation5 + $0x258] sm:$0xff]
    %v154 = vld [vmem:[#allocation5 + $0x260] sm:$0xff]
    %v155 = vld [vmem:[#allocation5 + $0x268] sm:$0xff]
    %v156 = vld [vmem:[#allocation5 + $0x270] sm:$0xff]
    %v157 = vld [vmem:[#allocation5 + $0x278] sm:$0xff]
    %v158 = vld [vmem:[#allocation5 + $0x280] sm:$0xff]
    %v159 = vld [vmem:[#allocation5 + $0x288] sm:$0xff]
    %v160 = vld [vmem:[#allocation5 + $0x290] sm:$0xff]
    %v161 = vld [vmem:[#allocation5 + $0x298] sm:$0xff]
    %v162 = vld [vmem:[#allocation5 + $0x2a0] sm:$0xff]
    %v163 = vld [vmem:[#allocation5 + $0x2a8] sm:$0xff]
    %v164 = vld [vmem:[#allocation5 + $0x2b0] sm:$0xff]
    %v165 = vld [vmem:[#allocation5 + $0x2b8] sm:$0xff]
    %v166 = vld [vmem:[#allocation5 + $0x2c0] sm:$0xff]
    %v167 = vld [vmem:[#allocation5 + $0x2c8] sm:$0xff]
    %v168 = vld [vmem:[#allocation5 + $0x2d0] sm:$0xff]
    %v169 = vld [vmem:[#allocation5 + $0x2d8] sm:$0xff]
    %v170 = vld [vmem:[#allocation5 + $0x2e0] sm:$0xff]
    %v171 = vld [vmem:[#allocation5 + $0x2e8] sm:$0xff]
    %v172 = vld [vmem:[#allocation5 + $0x2f0] sm:$0xff]
    %v173 = vld [vmem:[#allocation5 + $0x2f8] sm:$0xff]
    %v174 = vld [vmem:[#allocation5 + $0x300] sm:$0xff]
    %v175 = vld [vmem:[#allocation5 + $0x308] sm:$0xff]
    %v176 = vld [vmem:[%s1] sm:$0xf]
    %v177 = vld [vmem:[#allocation7] sm:$0xff]
    %v178 = vld [vmem:[#allocation7 + $0x8] sm:$0x11]
    %v181 = vunpack.c.l.b16 %v177
    %v182 = vunpack.c.h.b16 %v177
    %v183 = vunpack.c.l.b16 %v178
    %v184 = vunpack.c.h.b16 %v178
    %v185 = vpack.c.b16 %v183, %v181
    %v186 = vpack.c.b16 %v184, %v182
    %vm187 = vcmask 80896
    %v189 = vsel %vm187, %v176, 0
    %vm191 = vcmask 1044480
    %v193 = vsel %vm191, %v185, 0
    %v196 = vsel %vm191, %v186, 0
    %198 = vmatprep.subr.bf16.mxu0 %v196
    %199 = vmatpush1.bf16.msra.mxu0 %v193
    %200 = vmatprep.subr.bf16.mxu0 0
    %201 = vmatpush1.bf16.msra.mxu0 0
    %202 = vmatprep.subr.bf16.mxu0 0
    %203 = vmatpush1.bf16.msra.mxu0 0
    %204 = vmatprep.subr.bf16.mxu0 0
    %205 = vmatpush1.bf16.msra.mxu0 0
    %206 = vmatprep.subr.bf16.mxu0 0
    %207 = vmatpush1.bf16.msra.mxu0 0
    %208 = vmatprep.subr.bf16.mxu0 0
    %209 = vmatpush1.bf16.msra.mxu0 0
    %210 = vmatprep.subr.bf16.mxu0 0
    %211 = vmatpush1.bf16.msra.mxu0 0
    %212 = vmatprep.subr.bf16.mxu0 0
    %213 = vmatpush1.bf16.msra.mxu0 0
    %214 = vmatprep.subr.bf16.mxu0 0
    %215 = vmatpush1.bf16.msra.mxu0 0
    %216 = vmatprep.subr.bf16.mxu0 0
    %217 = vmatpush1.bf16.msra.mxu0 0
    %218 = vmatprep.subr.bf16.mxu0 0
    %219 = vmatpush1.bf16.msra.mxu0 0
    %220 = vmatprep.subr.bf16.mxu0 0
    %221 = vmatpush1.bf16.msra.mxu0 0
    %222 = vmatprep.subr.bf16.mxu0 0
    %223 = vmatpush1.bf16.msra.mxu0 0
    %224 = vmatprep.subr.bf16.mxu0 0
    %225 = vmatpush1.bf16.msra.mxu0 0
    %226 = vmatprep.subr.bf16.mxu0 0
    %227 = vmatpush1.bf16.msra.mxu0 0
    %228 = vmatprep.subr.bf16.mxu0 0
    %229 = vmatpush1.bf16.msra.mxu0 0
    %230 = vmatprep.mubr.bf16.mxu0 0
    %231 = vmatmul.mubr.bf16.gmra.mrb[0].mxu0 %v189
    %v232 = vpop.f32.mrb[0].mxu0
    %v233 = vadd.f32 0.0, %v232
    %v234 = vpop.f32.mrb[0].mxu0
    %v235 = vadd.f32 0.0, %v234
    %v236 = vpop.f32.mrb[0].mxu0
    %v237 = vpop.f32.mrb[0].mxu0
    %238 = vdwg.mxu0
    %v243 = vunpack.c.l.b16 %v74
    %v244 = vunpack.c.h.b16 %v74
    %v245 = vunpack.c.l.b16 %v75
    %v246 = vunpack.c.h.b16 %v75
    %v247 = vunpack.c.l.b16 %v76
    %v248 = vunpack.c.h.b16 %v76
    %v249 = vunpack.c.l.b16 %v77
    %v250 = vpack.c.b16 %v243, %v243
    %v251 = vpack.c.b16 %v244, %v244
    %v252 = vpack.c.b16 %v245, %v245
    %v253 = vpack.c.b16 %v246, %v246
    %v254 = vpack.c.b16 %v247, %v247
    %v255 = vpack.c.b16 %v248, %v248
    %v256 = vpack.c.b16 %v249, %v249
    %v361 = vunpack.c.l.b16 %v78
    %v362 = vunpack.c.h.b16 %v78
    %v363 = vunpack.c.l.b16 %v79
    %v364 = vunpack.c.h.b16 %v79
    %v365 = vunpack.c.l.b16 %v80
    %v366 = vunpack.c.h.b16 %v80
    %v367 = vunpack.c.l.b16 %v81
    %v368 = vunpack.c.h.b16 %v81
    %v369 = vunpack.c.l.b16 %v82
    %v370 = vunpack.c.h.b16 %v82
    %v371 = vunpack.c.l.b16 %v83
    %v372 = vunpack.c.h.b16 %v83
    %v373 = vunpack.c.l.b16 %v84
    %v374 = vunpack.c.h.b16 %v84
    %v375 = vunpack.c.l.b16 %v85
    %v376 = vunpack.c.h.b16 %v85
    %v377 = vunpack.c.l.b16 %v86
    %v378 = vunpack.c.h.b16 %v86
    %v379 = vunpack.c.l.b16 %v87
    %v380 = vunpack.c.h.b16 %v87
    %v381 = vunpack.c.l.b16 %v88
    %v382 = vunpack.c.h.b16 %v88
    %v383 = vunpack.c.l.b16 %v89
    %v384 = vunpack.c.h.b16 %v89
    %v385 = vunpack.c.l.b16 %v90
    %v386 = vunpack.c.h.b16 %v90
    %v387 = vunpack.c.l.b16 %v91
    %v388 = vunpack.c.h.b16 %v91
    %v389 = vunpack.c.l.b16 %v92
    %v390 = vunpack.c.h.b16 %v92
    %v391 = vunpack.c.l.b16 %v93
    %v392 = vunpack.c.h.b16 %v93
    %v393 = vunpack.c.l.b16 %v94
    %v394 = vunpack.c.h.b16 %v94
    %v395 = vunpack.c.l.b16 %v95
    %v396 = vunpack.c.h.b16 %v95
    %v397 = vunpack.c.l.b16 %v96
    %v398 = vunpack.c.h.b16 %v96
    %v399 = vunpack.c.l.b16 %v97
    %v400 = vunpack.c.h.b16 %v97
    %v401 = vunpack.c.l.b16 %v98
    %v402 = vunpack.c.h.b16 %v98
    %v403 = vunpack.c.l.b16 %v99
    %v404 = vunpack.c.h.b16 %v99
    %v405 = vunpack.c.l.b16 %v100
    %v406 = vunpack.c.h.b16 %v100
    %v407 = vunpack.c.l.b16 %v101
    %v408 = vunpack.c.h.b16 %v101
    %v409 = vunpack.c.l.b16 %v102
    %v410 = vunpack.c.h.b16 %v102
    %v411 = vunpack.c.l.b16 %v103
    %v412 = vunpack.c.h.b16 %v103
    %v413 = vunpack.c.l.b16 %v104
    %v414 = vunpack.c.h.b16 %v104
    %v415 = vunpack.c.l.b16 %v105
    %v416 = vunpack.c.h.b16 %v105
    %v417 = vunpack.c.l.b16 %v106
    %v418 = vunpack.c.h.b16 %v106
    %v419 = vunpack.c.l.b16 %v107
    %v420 = vunpack.c.h.b16 %v107
    %v421 = vunpack.c.l.b16 %v108
    %v422 = vunpack.c.h.b16 %v108
    %v423 = vunpack.c.l.b16 %v109
    %v424 = vunpack.c.h.b16 %v109
    %v425 = vunpack.c.l.b16 %v110
    %v426 = vunpack.c.h.b16 %v110
    %v427 = vunpack.c.l.b16 %v111
    %v428 = vunpack.c.h.b16 %v111
    %v429 = vunpack.c.l.b16 %v112
    %v430 = vunpack.c.h.b16 %v112
    %v431 = vunpack.c.l.b16 %v113
    %v432 = vunpack.c.h.b16 %v113
    %v433 = vunpack.c.l.b16 %v114
    %v434 = vunpack.c.h.b16 %v114
    %v435 = vunpack.c.l.b16 %v115
    %v436 = vunpack.c.h.b16 %v115
    %v437 = vunpack.c.l.b16 %v116
    %v438 = vunpack.c.h.b16 %v116
    %v439 = vunpack.c.l.b16 %v117
    %v440 = vunpack.c.h.b16 %v117
    %v441 = vunpack.c.l.b16 %v118
    %v442 = vunpack.c.h.b16 %v118
    %v443 = vunpack.c.l.b16 %v119
    %v444 = vunpack.c.h.b16 %v119
    %v445 = vunpack.c.l.b16 %v120
    %v446 = vunpack.c.h.b16 %v120
    %v447 = vunpack.c.l.b16 %v121
    %v448 = vunpack.c.h.b16 %v121
    %v449 = vunpack.c.l.b16 %v122
    %v450 = vunpack.c.h.b16 %v122
    %v451 = vunpack.c.l.b16 %v123
    %v452 = vunpack.c.h.b16 %v123
    %v453 = vunpack.c.l.b16 %v124
    %v454 = vunpack.c.h.b16 %v124
    %v455 = vunpack.c.l.b16 %v125
    %v456 = vunpack.c.h.b16 %v125
    %v457 = vunpack.c.l.b16 %v126
    %v458 = vunpack.c.h.b16 %v126
    %v459 = vunpack.c.l.b16 %v127
    %v460 = vunpack.c.h.b16 %v127
    %v461 = vunpack.c.l.b16 %v128
    %v462 = vunpack.c.h.b16 %v128
    %v463 = vunpack.c.l.b16 %v129
    %v464 = vunpack.c.h.b16 %v129
    %v465 = vunpack.c.l.b16 %v130
    %v466 = vunpack.c.h.b16 %v130
    %v467 = vunpack.c.l.b16 %v131
    %v468 = vunpack.c.h.b16 %v131
    %v469 = vunpack.c.l.b16 %v132
    %v470 = vunpack.c.h.b16 %v132
    %v471 = vunpack.c.l.b16 %v133
    %v472 = vunpack.c.h.b16 %v133
    %v473 = vunpack.c.l.b16 %v134
    %v474 = vunpack.c.h.b16 %v134
    %v475 = vunpack.c.l.b16 %v135
    %v476 = vunpack.c.h.b16 %v135
    %v477 = vunpack.c.l.b16 %v136
    %v478 = vunpack.c.h.b16 %v136
    %v479 = vunpack.c.l.b16 %v137
    %v480 = vunpack.c.h.b16 %v137
    %v481 = vunpack.c.l.b16 %v138
    %v482 = vunpack.c.h.b16 %v138
    %v483 = vunpack.c.l.b16 %v139
    %v484 = vunpack.c.h.b16 %v139
    %v485 = vunpack.c.l.b16 %v140
    %v486 = vunpack.c.h.b16 %v140
    %v487 = vunpack.c.l.b16 %v141
    %v488 = vunpack.c.h.b16 %v141
    %v489 = vunpack.c.l.b16 %v142
    %v490 = vunpack.c.h.b16 %v142
    %v491 = vunpack.c.l.b16 %v143
    %v492 = vunpack.c.h.b16 %v143
    %v493 = vunpack.c.l.b16 %v144
    %v494 = vunpack.c.h.b16 %v144
    %v495 = vunpack.c.l.b16 %v145
    %v496 = vunpack.c.h.b16 %v145
    %v497 = vunpack.c.l.b16 %v146
    %v498 = vunpack.c.h.b16 %v146
    %v499 = vunpack.c.l.b16 %v147
    %v500 = vunpack.c.h.b16 %v147
    %v501 = vunpack.c.l.b16 %v148
    %v502 = vunpack.c.h.b16 %v148
    %v503 = vunpack.c.l.b16 %v149
    %v504 = vunpack.c.h.b16 %v149
    %v505 = vunpack.c.l.b16 %v150
    %v506 = vunpack.c.h.b16 %v150
    %v507 = vunpack.c.l.b16 %v151
    %v508 = vunpack.c.h.b16 %v151
    %v509 = vunpack.c.l.b16 %v152
    %v510 = vunpack.c.h.b16 %v152
    %v511 = vunpack.c.l.b16 %v153
    %v512 = vunpack.c.h.b16 %v153
    %v513 = vunpack.c.l.b16 %v154
    %v514 = vunpack.c.h.b16 %v154
    %v515 = vunpack.c.l.b16 %v155
    %v516 = vunpack.c.h.b16 %v155
    %v517 = vunpack.c.l.b16 %v156
    %v518 = vunpack.c.h.b16 %v156
    %v519 = vunpack.c.l.b16 %v157
    %v520 = vunpack.c.h.b16 %v157
    %v521 = vunpack.c.l.b16 %v158
    %v522 = vunpack.c.h.b16 %v158
    %v523 = vunpack.c.l.b16 %v159
    %v524 = vunpack.c.h.b16 %v159
    %v525 = vunpack.c.l.b16 %v160
    %v526 = vunpack.c.h.b16 %v160
    %v527 = vunpack.c.l.b16 %v161
    %v528 = vunpack.c.h.b16 %v161
    %v529 = vunpack.c.l.b16 %v162
    %v530 = vunpack.c.h.b16 %v162
    %v531 = vunpack.c.l.b16 %v163
    %v532 = vunpack.c.h.b16 %v163
    %v533 = vunpack.c.l.b16 %v164
    %v534 = vunpack.c.h.b16 %v164
    %v535 = vunpack.c.l.b16 %v165
    %v536 = vunpack.c.h.b16 %v165
    %v537 = vunpack.c.l.b16 %v166
    %v538 = vunpack.c.h.b16 %v166
    %v539 = vunpack.c.l.b16 %v167
    %v540 = vunpack.c.h.b16 %v167
    %v541 = vunpack.c.l.b16 %v168
    %v542 = vunpack.c.h.b16 %v168
    %v543 = vunpack.c.l.b16 %v169
    %v544 = vunpack.c.h.b16 %v169
    %v545 = vunpack.c.l.b16 %v170
    %v546 = vunpack.c.h.b16 %v170
    %v547 = vunpack.c.l.b16 %v171
    %v548 = vunpack.c.h.b16 %v171
    %v549 = vunpack.c.l.b16 %v172
    %v550 = vunpack.c.h.b16 %v172
    %v551 = vunpack.c.l.b16 %v173
    %v552 = vunpack.c.h.b16 %v173
    %v553 = vunpack.c.l.b16 %v174
    %v554 = vunpack.c.h.b16 %v174
    %v555 = vunpack.c.l.b16 %v175
    %v556 = vunpack.c.h.b16 %v175
    %v557 = vpack.c.b16 %v363, %v361
    %v558 = vpack.c.b16 %v364, %v362
    %v559 = vpack.c.b16 %v367, %v365
    %v560 = vpack.c.b16 %v368, %v366
    %v561 = vpack.c.b16 %v371, %v369
    %v562 = vpack.c.b16 %v372, %v370
    %v563 = vpack.c.b16 %v375, %v373
    %v564 = vpack.c.b16 %v376, %v374
    %v565 = vpack.c.b16 %v379, %v377
    %v566 = vpack.c.b16 %v380, %v378
    %v567 = vpack.c.b16 %v383, %v381
    %v568 = vpack.c.b16 %v384, %v382
    %v569 = vpack.c.b16 %v387, %v385
    %v570 = vpack.c.b16 %v388, %v386
    %v571 = vpack.c.b16 %v391, %v389
    %v572 = vpack.c.b16 %v392, %v390
    %v573 = vpack.c.b16 %v395, %v393
    %v574 = vpack.c.b16 %v396, %v394
    %v575 = vpack.c.b16 %v399, %v397
    %v576 = vpack.c.b16 %v400, %v398
    %v577 = vpack.c.b16 %v403, %v401
    %v578 = vpack.c.b16 %v404, %v402
    %v579 = vpack.c.b16 %v407, %v405
    %v580 = vpack.c.b16 %v408, %v406
    %v581 = vpack.c.b16 %v411, %v409
    %v582 = vpack.c.b16 %v412, %v410
    %v583 = vpack.c.b16 %v415, %v413
    %v584 = vpack.c.b16 %v416, %v414
    %v585 = vpack.c.b16 %v419, %v417
    %v586 = vpack.c.b16 %v420, %v418
    %v587 = vpack.c.b16 %v423, %v421
    %v588 = vpack.c.b16 %v424, %v422
    %v589 = vpack.c.b16 %v427, %v425
    %v590 = vpack.c.b16 %v428, %v426
    %v591 = vpack.c.b16 %v431, %v429
    %v592 = vpack.c.b16 %v432, %v430
    %v593 = vpack.c.b16 %v435, %v433
    %v594 = vpack.c.b16 %v436, %v434
    %v595 = vpack.c.b16 %v439, %v437
    %v596 = vpack.c.b16 %v440, %v438
    %v597 = vpack.c.b16 %v443, %v441
    %v598 = vpack.c.b16 %v444, %v442
    %v599 = vpack.c.b16 %v447, %v445
    %v600 = vpack.c.b16 %v448, %v446
    %v601 = vpack.c.b16 %v451, %v449
    %v602 = vpack.c.b16 %v452, %v450
    %v603 = vpack.c.b16 %v455, %v453
    %v604 = vpack.c.b16 %v456, %v454
    %v605 = vpack.c.b16 %v459, %v457
    %v606 = vpack.c.b16 %v460, %v458
    %v607 = vpack.c.b16 %v463, %v461
    %v608 = vpack.c.b16 %v464, %v462
    %v609 = vpack.c.b16 %v467, %v465
    %v610 = vpack.c.b16 %v468, %v466
    %v611 = vpack.c.b16 %v471, %v469
    %v612 = vpack.c.b16 %v472, %v470
    %v613 = vpack.c.b16 %v475, %v473
    %v614 = vpack.c.b16 %v476, %v474
    %v615 = vpack.c.b16 %v479, %v477
    %v616 = vpack.c.b16 %v480, %v478
    %v617 = vpack.c.b16 %v483, %v481
    %v618 = vpack.c.b16 %v484, %v482
    %v619 = vpack.c.b16 %v487, %v485
    %v620 = vpack.c.b16 %v488, %v486
    %v621 = vpack.c.b16 %v491, %v489
    %v622 = vpack.c.b16 %v492, %v490
    %v623 = vpack.c.b16 %v495, %v493
    %v624 = vpack.c.b16 %v496, %v494
    %v625 = vpack.c.b16 %v499, %v497
    %v626 = vpack.c.b16 %v500, %v498
    %v627 = vpack.c.b16 %v503, %v501
    %v628 = vpack.c.b16 %v504, %v502
    %v629 = vpack.c.b16 %v507, %v505
    %v630 = vpack.c.b16 %v508, %v506
    %v631 = vpack.c.b16 %v511, %v509
    %v632 = vpack.c.b16 %v512, %v510
    %v633 = vpack.c.b16 %v515, %v513
    %v634 = vpack.c.b16 %v516, %v514
    %v635 = vpack.c.b16 %v519, %v517
    %v636 = vpack.c.b16 %v520, %v518
    %v637 = vpack.c.b16 %v523, %v521
    %v638 = vpack.c.b16 %v524, %v522
    %v639 = vpack.c.b16 %v527, %v525
    %v640 = vpack.c.b16 %v528, %v526
    %v641 = vpack.c.b16 %v531, %v529
    %v642 = vpack.c.b16 %v532, %v530
    %v643 = vpack.c.b16 %v535, %v533
    %v644 = vpack.c.b16 %v536, %v534
    %v645 = vpack.c.b16 %v539, %v537
    %v646 = vpack.c.b16 %v540, %v538
    %v647 = vpack.c.b16 %v543, %v541
    %v648 = vpack.c.b16 %v544, %v542
    %v649 = vpack.c.b16 %v547, %v545
    %v650 = vpack.c.b16 %v548, %v546
    %v651 = vpack.c.b16 %v551, %v549
    %v652 = vpack.c.b16 %v552, %v550
    %v653 = vpack.c.b16 %v555, %v553
    %v654 = vpack.c.b16 %v556, %v554
    %vm753 = vcmask 130048
    %v755 = vsel %vm753, %v256, 0
    %757 = vmatprep.subr.bf16.mxu0 %v558
    %758 = vmatpush1.bf16.msra.mxu0 %v557
    %759 = vmatprep.subr.bf16.mxu0 %v560
    %760 = vmatpush1.bf16.msra.mxu0 %v559
    %761 = vmatprep.subr.bf16.mxu0 %v562
    %762 = vmatpush1.bf16.msra.mxu0 %v561
    %763 = vmatprep.subr.bf16.mxu0 %v564
    %764 = vmatpush1.bf16.msra.mxu0 %v563
    %765 = vmatprep.subr.bf16.mxu0 %v566
    %766 = vmatpush1.bf16.msra.mxu0 %v565
    %767 = vmatprep.subr.bf16.mxu0 %v568
    %768 = vmatpush1.bf16.msra.mxu0 %v567
    %769 = vmatprep.subr.bf16.mxu0 %v570
    %770 = vmatpush1.bf16.msra.mxu0 %v569
    %771 = vmatprep.subr.bf16.mxu0 %v572
    %772 = vmatpush1.bf16.msra.mxu0 %v571
    %773 = vmatprep.subr.bf16.mxu0 %v574
    %774 = vmatpush1.bf16.msra.mxu0 %v573
    %775 = vmatprep.subr.bf16.mxu0 %v576
    %776 = vmatpush1.bf16.msra.mxu0 %v575
    %777 = vmatprep.subr.bf16.mxu0 %v578
    %778 = vmatpush1.bf16.msra.mxu0 %v577
    %779 = vmatprep.subr.bf16.mxu0 %v580
    %780 = vmatpush1.bf16.msra.mxu0 %v579
    %781 = vmatprep.subr.bf16.mxu0 %v582
    %782 = vmatpush1.bf16.msra.mxu0 %v581
    %783 = vmatprep.subr.bf16.mxu0 %v584
    %784 = vmatpush1.bf16.msra.mxu0 %v583
    %785 = vmatprep.subr.bf16.mxu0 %v586
    %786 = vmatpush1.bf16.msra.mxu0 %v585
    %787 = vmatprep.subr.bf16.mxu0 %v588
    %788 = vmatpush1.bf16.msra.mxu0 %v587
    %789 = vmatprep.mubr.bf16.mxu0 %v251
    %790 = vmatmul.mubr.bf16.gmra.mrb[0].mxu0 %v250
    %v791 = vpop.f32.mrb[0].mxu0
    %v792 = vadd.f32 %v233, %v791
    %v793 = vpop.f32.mrb[0].mxu0
    %v794 = vadd.f32 %v235, %v793
    %v795 = vpop.f32.mrb[0].mxu0
    %v796 = vpop.f32.mrb[0].mxu0
    %797 = vdwg.mxu0
    %798 = vmatprep.subr.bf16.mxu0 %v590
    %799 = vmatpush1.bf16.msra.mxu0 %v589
    %800 = vmatprep.subr.bf16.mxu0 %v592
    %801 = vmatpush1.bf16.msra.mxu0 %v591
    %802 = vmatprep.subr.bf16.mxu0 %v594
    %803 = vmatpush1.bf16.msra.mxu0 %v593
    %804 = vmatprep.subr.bf16.mxu0 %v596
    %805 = vmatpush1.bf16.msra.mxu0 %v595
    %806 = vmatprep.subr.bf16.mxu0 %v598
    %807 = vmatpush1.bf16.msra.mxu0 %v597
    %808 = vmatprep.subr.bf16.mxu0 %v600
    %809 = vmatpush1.bf16.msra.mxu0 %v599
    %810 = vmatprep.subr.bf16.mxu0 %v602
    %811 = vmatpush1.bf16.msra.mxu0 %v601
    %812 = vmatprep.subr.bf16.mxu0 %v604
    %813 = vmatpush1.bf16.msra.mxu0 %v603
    %814 = vmatprep.subr.bf16.mxu0 %v606
    %815 = vmatpush1.bf16.msra.mxu0 %v605
    %816 = vmatprep.subr.bf16.mxu0 %v608
    %817 = vmatpush1.bf16.msra.mxu0 %v607
    %818 = vmatprep.subr.bf16.mxu0 %v610
    %819 = vmatpush1.bf16.msra.mxu0 %v609
    %820 = vmatprep.subr.bf16.mxu0 %v612
    %821 = vmatpush1.bf16.msra.mxu0 %v611
    %822 = vmatprep.subr.bf16.mxu0 %v614
    %823 = vmatpush1.bf16.msra.mxu0 %v613
    %824 = vmatprep.subr.bf16.mxu0 %v616
    %825 = vmatpush1.bf16.msra.mxu0 %v615
    %826 = vmatprep.subr.bf16.mxu0 %v618
    %827 = vmatpush1.bf16.msra.mxu0 %v617
    %828 = vmatprep.subr.bf16.mxu0 %v620
    %829 = vmatpush1.bf16.msra.mxu0 %v619
    %830 = vmatprep.mubr.bf16.mxu0 %v253
    %831 = vmatmul.mubr.bf16.gmra.mrb[0].mxu0 %v252
    %v832 = vpop.f32.mrb[0].mxu0
    %v833 = vadd.f32 %v792, %v832
    %v834 = vpop.f32.mrb[0].mxu0
    %v835 = vadd.f32 %v794, %v834
    %v836 = vpop.f32.mrb[0].mxu0
    %v837 = vpop.f32.mrb[0].mxu0
    %838 = vdwg.mxu0
    %839 = vmatprep.subr.bf16.mxu0 %v622
    %840 = vmatpush1.bf16.msra.mxu0 %v621
    %841 = vmatprep.subr.bf16.mxu0 %v624
    %842 = vmatpush1.bf16.msra.mxu0 %v623
    %843 = vmatprep.subr.bf16.mxu0 %v626
    %844 = vmatpush1.bf16.msra.mxu0 %v625
    %845 = vmatprep.subr.bf16.mxu0 %v628
    %846 = vmatpush1.bf16.msra.mxu0 %v627
    %847 = vmatprep.subr.bf16.mxu0 %v630
    %848 = vmatpush1.bf16.msra.mxu0 %v629
    %849 = vmatprep.subr.bf16.mxu0 %v632
    %850 = vmatpush1.bf16.msra.mxu0 %v631
    %851 = vmatprep.subr.bf16.mxu0 %v634
    %852 = vmatpush1.bf16.msra.mxu0 %v633
    %853 = vmatprep.subr.bf16.mxu0 %v636
    %854 = vmatpush1.bf16.msra.mxu0 %v635
    %855 = vmatprep.subr.bf16.mxu0 %v638
    %856 = vmatpush1.bf16.msra.mxu0 %v637
    %857 = vmatprep.subr.bf16.mxu0 %v640
    %858 = vmatpush1.bf16.msra.mxu0 %v639
    %859 = vmatprep.subr.bf16.mxu0 %v642
    %860 = vmatpush1.bf16.msra.mxu0 %v641
    %861 = vmatprep.subr.bf16.mxu0 %v644
    %862 = vmatpush1.bf16.msra.mxu0 %v643
    %863 = vmatprep.subr.bf16.mxu0 %v646
    %864 = vmatpush1.bf16.msra.mxu0 %v645
    %865 = vmatprep.subr.bf16.mxu0 %v648
    %866 = vmatpush1.bf16.msra.mxu0 %v647
    %867 = vmatprep.subr.bf16.mxu0 %v650
    %868 = vmatpush1.bf16.msra.mxu0 %v649
    %869 = vmatprep.subr.bf16.mxu0 %v652
    %870 = vmatpush1.bf16.msra.mxu0 %v651
    %871 = vmatprep.mubr.bf16.mxu0 %v255
    %872 = vmatmul.mubr.bf16.gmra.mrb[0].mxu0 %v254
    %v873 = vpop.f32.mrb[0].mxu0
    %v874 = vadd.f32 %v833, %v873
    %v875 = vpop.f32.mrb[0].mxu0
    %v876 = vadd.f32 %v835, %v875
    %v877 = vpop.f32.mrb[0].mxu0
    %v878 = vpop.f32.mrb[0].mxu0
    %879 = vdwg.mxu0
    %880 = vmatprep.subr.bf16.mxu0 %v654
    %881 = vmatpush1.bf16.msra.mxu0 %v653
    %882 = vmatprep.subr.bf16.mxu0 0
    %883 = vmatpush1.bf16.msra.mxu0 0
    %884 = vmatprep.subr.bf16.mxu0 0
    %885 = vmatpush1.bf16.msra.mxu0 0
    %886 = vmatprep.subr.bf16.mxu0 0
    %887 = vmatpush1.bf16.msra.mxu0 0
    %888 = vmatprep.subr.bf16.mxu0 0
    %889 = vmatpush1.bf16.msra.mxu0 0
    %890 = vmatprep.subr.bf16.mxu0 0
    %891 = vmatpush1.bf16.msra.mxu0 0
    %892 = vmatprep.subr.bf16.mxu0 0
    %893 = vmatpush1.bf16.msra.mxu0 0
    %894 = vmatprep.subr.bf16.mxu0 0
    %895 = vmatpush1.bf16.msra.mxu0 0
    %896 = vmatprep.subr.bf16.mxu0 0
    %897 = vmatpush1.bf16.msra.mxu0 0
    %898 = vmatprep.subr.bf16.mxu0 0
    %899 = vmatpush1.bf16.msra.mxu0 0
    %900 = vmatprep.subr.bf16.mxu0 0
    %901 = vmatpush1.bf16.msra.mxu0 0
    %902 = vmatprep.subr.bf16.mxu0 0
    %903 = vmatpush1.bf16.msra.mxu0 0
    %904 = vmatprep.subr.bf16.mxu0 0
    %905 = vmatpush1.bf16.msra.mxu0 0
    %906 = vmatprep.subr.bf16.mxu0 0
    %907 = vmatpush1.bf16.msra.mxu0 0
    %908 = vmatprep.subr.bf16.mxu0 0
    %909 = vmatpush1.bf16.msra.mxu0 0
    %910 = vmatprep.subr.bf16.mxu0 0
    %911 = vmatpush1.bf16.msra.mxu0 0
    %912 = vmatprep.mubr.bf16.mxu0 0
    %913 = vmatmul.mubr.bf16.gmra.mrb[0].mxu0 %v755
    %v914 = vpop.f32.mrb[0].mxu0
    %v915 = vadd.f32 %v874, %v914
    %v916 = vpop.f32.mrb[0].mxu0
    %v917 = vadd.f32 %v876, %v916
    %v918 = vpop.f32.mrb[0].mxu0
    %v919 = vpop.f32.mrb[0].mxu0
    %920 = vdwg.mxu0
    %v921 = vld [vmem:[%s4] sm:$0x3]
    %v923 = vlaneseq
    %v924 = vshrl.u32 %v923, 7
    %v925 = vsub.s32 0, %v924
    %v926 = vrot.slane %v921, %v925
    %v927 = vlaneseq
    %v928 = vshrl.u32 %v927, 7
    %v929 = vsub.s32 1, %v928
    %v930 = vrot.slane %v921, %v929
    %v933 = vadd.f32 %v915, %v926
    %v934 = vadd.f32 %v917, %v930
    %vm935 = vcmp.gt.f32.partialorder %v933, 0.0
    %vm936 = vcmp.gt.f32.partialorder %v934, 0.0
    %v937 = vmul.f32 %v933, 0.02
    %v938 = vmul.f32 %v934, 0.02
    %v939 = vsel %vm935, %v933, %v937
    %v940 = vsel %vm936, %v934, %v938
    %v941 = vadd.f32 %v939, %v940
    %942 = vadd.xlane.f32.xlu0 %v941
    %v943 = vpop.xlane.xlu0 %942
    %v944 = vmul.f32 %v943, 0.005
    %v945 = vmul.f32 %v939, %v939
    %v946 = vmul.f32 %v940, %v940
    %v947 = vadd.f32 %v945, %v946
    %948 = vadd.xlane.f32.xlu0 %v947
    %v949 = vpop.xlane.xlu0 %948
    %v950 = vmul.f32 %v949, 0.005
    %v951 = vmul.f32 %v944, %v944
    %v952 = vsub.f32 %v950, %v951
    %v953 = vsub.f32 %v939, %v944
    %v954 = vsub.f32 %v940, %v944
    %v955 = vadd.f32 %v952, 1e-05
    %v956 = vrsqrt.pop %v955
    %v957 = vmul.f32 %v953, %v956
    %v958 = vmul.f32 %v954, %v956
    %v959 = vld [vmem:[%s5] sm:$0x3]
    %v961 = vlaneseq
    %v962 = vshrl.u32 %v961, 7
    %v963 = vsub.s32 0, %v962
    %v964 = vrot.slane %v959, %v963
    %v965 = vlaneseq
    %v966 = vshrl.u32 %v965, 7
    %v967 = vsub.s32 1, %v966
    %v968 = vrot.slane %v959, %v967
    %v971 = vmul.f32 %v957, %v964
    %v972 = vmul.f32 %v958, %v968
    %v973 = vld [vmem:[%s6] sm:$0x3]
    %v975 = vlaneseq
    %v976 = vshrl.u32 %v975, 7
    %v977 = vsub.s32 0, %v976
    %v978 = vrot.slane %v973, %v977
    %v979 = vlaneseq
    %v980 = vshrl.u32 %v979, 7
    %v981 = vsub.s32 1, %v980
    %v982 = vrot.slane %v973, %v981
    %v985 = vadd.f32 %v971, %v978
    %v986 = vadd.f32 %v972, %v982
    %v987 = vld [vmem:[%s7] sm:$0x3]
    %v989 = vlaneseq
    %v990 = vshrl.u32 %v989, 7
    %v991 = vsub.s32 0, %v990
    %v992 = vrot.slane %v987, %v991
    %v993 = vlaneseq
    %v994 = vshrl.u32 %v993, 7
    %v995 = vsub.s32 1, %v994
    %v996 = vrot.slane %v987, %v995
    %v999 = vmul.f32 %v985, %v992
    %v1000 = vmul.f32 %v986, %v996
    %v1001 = vadd.f32 %v999, %v1000
    %1002 = vadd.xlane.f32.xlu0 %v1001
    %v1003 = vpop.xlane.xlu0 %1002
    %v1004 = vld [vmem:[#allocation2] sm:$0x1]
    %v1006 = vlaneseq
    %v1007 = vshrl.u32 %v1006, 7
    %v1008 = vsub.s32 0, %v1007
    %v1009 = vrot.slane %v1004, %v1008
    %v1011 = vadd.f32 %v1003, %v1009
    %v1012 = vxor.u32 %v1011, 2147483648
    %v1013 = vmul.f32 %v1012, 1.442695
    %v1014 = vpow.pop %v1013
    %v1015 = vadd.f32 %v1014, 1.0
    %v1016 = vrcp.pop %v1015
    %v1017 = vmul.f32 1.0, %v1016
    %vm1018 = vcmask 7168
    %1019 = vst.msk [vmem:[%s9] sm:$0xff] %vm1018, %v1017
    // Predicated region
    $region50: #{tpu_custom_call.1} parent=1 // pred_check
      _
    $region51: #{tpu_custom_call.1} parent=1 // pred_check_branch
      %1021 = sbr.rel (0) target = $region53
    $region52: #{tpu_custom_call.1} parent=1 // pred_region
      _
    $region53: #{tpu_custom_call.1} parent=1 // pred_fallthru
      _
    // Predicated region
    $region54: #{tpu_custom_call.1} parent=1 // pred_check
      _
    $region55: #{tpu_custom_call.1} parent=1 // pred_check_branch
      %1023 = sbr.rel (0) target = $region57
    $region56: #{tpu_custom_call.1} parent=1 // pred_region
      _
    $region57: #{tpu_custom_call.1} parent=1 // pred_fallthru
      _
    %1024 = vsyncpa [#allocation4], 1
    %1025 = vsyncpa [#allocation6], 1

</llo_original>
